<compile_context>
chip_gen: v7x
topology: tpu7x:2x2x1
jax: 0.10.0
libtpu: 0.0.40
codegen_flags: <defaults>
</compile_context>

<pallas_src>
import math
import functools

import jax
import jax.numpy as jnp
from jax import lax
from jax.experimental import pallas as pl
from jax.experimental.pallas import tpu as pltpu

PITCH = 1.0 / (2.0 * math.pi)
_MiB = 1024 * 1024


def _round_up(x, m):
    return ((x + m - 1) // m) * m


@functools.lru_cache(maxsize=None)
def _hw_config():
    """Generation-aware (scoped_vmem_budget, target_out_bytes_per_step, min_grid_steps)."""
    kind = ""
    try:
        kind = jax.devices()[0].device_kind.lower()
    except Exception:
        pass
    phys = None
    try:
        info = pltpu.get_tpu_info()
        for name in ("vmem_capacity_bytes", "vmem_bytes", "vmem_size_bytes"):
            v = getattr(info, name, None)
            if v:
                phys = int(v)
                break
    except Exception:
        pass

    if ("v5" in kind) or ("v6" in kind):
        # v5e / v6e: 128 MiB physical VMEM, single TensorCore, write-bound HBM.
        budget, target, min_steps = 96 * _MiB, 24 * _MiB, 4
    else:
        # v7x (or unknown -> stay conservative): 64 MiB per-TC VMEM, 2 TCs.
        budget, target, min_steps = 48 * _MiB, 8 * _MiB, 8
    if phys:
        budget = min(budget, (3 * phys) // 4)
    return budget, target, min_steps


def _choose_tiling(BN, demb, WH, vmem_budget, target_out_bytes, min_steps):
    """Pick (row_block, wh_block) for blocks r/a:(rows, wh), out:(rows, demb, wh)."""
    demb_p = _round_up(demb, 8)       # f32 sublane padding of the output tiles
    WH_p = _round_up(WH, 128)         # lane padding

    def step_bytes(tb, twh):
        # Single-buffered VMEM of one grid step: two f32 (tb, twh) inputs
        # (tb padded to 8 sublanes) + two f32 (tb, demb, twh) outputs
        # (demb padded to 8 sublanes); twh already lane-aligned here.
        return 4 * (2 * _round_up(tb, 8) * twh + 2 * tb * demb_p * twh)

    # Per-step budget: pipeline double-buffers ins/outs, keep slack for the
    # freq block and compiler-internal scratch.
    budget = max(1 * _MiB, vmem_budget // 2 - 2 * _MiB)

    min_rows = min(BN, 8)
    if step_bytes(min_rows, WH_p) <= budget:
        # Full-WH blocks: size the row block to hit the target output slab,
        # stay inside the VMEM budget, and (when the problem is big enough)
        # keep >= min_steps grid steps for per-core pipelining / megacore.
        row_bytes = 4 * (2 * WH_p + 2 * demb_p * WH_p)
        tb = min(budget // row_bytes,
                 max(1, target_out_bytes // (8 * demb_p * WH_p)))
        if BN >= min_steps * 8:
            tb = min(tb, BN // min_steps)
        if tb >= BN:
            tb = BN                           # single block == full dim (legal)
        else:
            tb = max(8, (tb // 8) * 8)        # sublane-aligned; ragged tail is masked
        return int(tb), int(WH)               # full-extent lane block (always legal)

    # WH too large for VMEM: tile the lane axis in multiples of 128.
    tb = min_rows
    twh = budget // (4 * (2 * _round_up(tb, 8) + 2 * tb * demb_p))
    twh = max(128, (twh // 128) * 128)        # pathological demb may still overshoot
    return int(tb), int(min(twh, WH_p))


def _helix_kernel(r_ref, a_ref, freq_ref, o_real_ref, o_imag_ref):
    # r_ref, a_ref        : (TB, TWH)        f32  (rows on sublanes, TWH on lanes)
    # freq_ref            : (demb, 1)        f32  (grid-resident)
    # o_real/o_imag_ref   : (TB, demb, TWH)  f32
    nrows = r_ref.shape[0]
    f = freq_ref[...]                                   # (demb, 1)

    def body(t, carry):
        r = r_ref[pl.ds(t, 1), :]                       # (1, TWH)  sublane row t
        a = a_ref[pl.ds(t, 1), :]                       # (1, TWH)
        inv = f * r                                     # (demb, TWH): lane-bcast f, sublane-bcast r
        phase = inv + a                                 # == einsum('bwh,c->bcwh') + A.repeat
        v = inv * PITCH
        o_real_ref[pl.ds(t, 1), :, :] = (v * jnp.cos(phase))[None]
        o_imag_ref[pl.ds(t, 1), :, :] = (v * jnp.sin(phase))[None]
        return carry

    lax.fori_loop(0, nrows, body, 0)


@functools.partial(jax.jit, static_argnames=("demb",))
def helix_embedding(R_matrix, A_matrix, inv_freq, *, demb):
    """R_matrix, A_matrix: (B, N, 1, W, H) float32.  Returns (real, imag) of
    shape (B, N, demb, W, H), matching the PyTorch module (bsz=None)."""
    B, N, one, W, H = R_matrix.shape
    assert one == 1 and A_matrix.shape == R_matrix.shape
    BN, WH = B * N, W * H

    # 2-D inputs: no sublane padding of the input tiles.
    r_flat = R_matrix.reshape(BN, WH).astype(jnp.float32)
    a_flat = A_matrix.reshape(BN, WH).astype(jnp.float32)
    freq = inv_freq.reshape(demb, 1).astype(jnp.float32)

    vmem_budget, target_out, min_steps = _hw_config()
    tb, twh = _choose_tiling(BN, demb, WH, vmem_budget, target_out, min_steps)
    grid = (pl.cdiv(BN, tb), pl.cdiv(WH, twh))

    out_shape = jax.ShapeDtypeStruct((BN, demb, WH), jnp.float32)

    elems = BN * demb * WH
    cost = pl.CostEstimate(
        flops=5 * elems,
        transcendentals=2 * elems,
        bytes_accessed=(2 * BN * WH + demb + 2 * elems) * 4,
    )

    real, imag = pl.pallas_call(
        _helix_kernel,
        out_shape=(out_shape, out_shape),
        grid_spec=pltpu.PrefetchScalarGridSpec(
            num_scalar_prefetch=0,
            grid=grid,
            in_specs=[
                pl.BlockSpec((tb, twh), lambda i, j: (i, j)),
                pl.BlockSpec((tb, twh), lambda i, j: (i, j)),
                pl.BlockSpec((demb, 1), lambda i, j: (0, 0)),
            ],
            out_specs=[
                pl.BlockSpec((tb, demb, twh), lambda i, j: (i, 0, j)),
                pl.BlockSpec((tb, demb, twh), lambda i, j: (i, 0, j)),
            ],
        ),
        compiler_params=pltpu.CompilerParams(
            dimension_semantics=("parallel", "parallel"),
            vmem_limit_bytes=int(max(vmem_budget, 32 * _MiB)),
        ),
        cost_estimate=cost,
    )(r_flat, a_flat, freq)

    real = real.reshape(B, N, demb, W, H)
    imag = imag.reshape(B, N, demb, W, H)
    return real, imag


def helix_embedding_ref(R_matrix, A_matrix, inv_freq):
    """Pure-JAX reference matching the PyTorch forward semantics."""
    R_press = jnp.squeeze(R_matrix, axis=2)                       # (B,N,W,H)
    A_dim = jnp.repeat(A_matrix, inv_freq.shape[0], axis=2)       # (B,N,demb,W,H)
    inv = jnp.einsum('bnwh,c->bncwh', R_press, inv_freq)
    phase = inv + A_dim
    v = inv * PITCH
    return v * jnp.cos(phase), v * jnp.sin(phase)


# TODO(synk): the bsz is not None branch of the PyTorch module indexes a 5-D
# tensor with [:, None, :].expand(-1, bsz, -1), which is shape-inconsistent in
# the original; only the bsz=None path is implemented.


if __name__ == "__main__":
    demb = 8
    B, N, W, H = 2, 4, 16, 16

    # Deterministic parameter init, matching the module __init__.
    inv_freq = 1.0 / (100.0 ** (jnp.arange(0.0, demb, 1.0) / demb))

    key = jax.random.PRNGKey(0)
    k1, k2 = jax.random.split(key)
    R_matrix = jax.random.normal(k1, (B, N, 1, W, H), dtype=jnp.float32)
    A_matrix = jax.random.normal(k2, (B, N, 1, W, H), dtype=jnp.float32)

    real, imag = helix_embedding(R_matrix, A_matrix, inv_freq, demb=demb)
    jax.block_until_ready((real, imag))

    real_ref, imag_ref = helix_embedding_ref(R_matrix, A_matrix, inv_freq)
    assert jnp.allclose(real, real_ref, atol=1e-5, rtol=1e-5)
    assert jnp.allclose(imag, imag_ref, atol=1e-5, rtol=1e-5)

    print("KERNEL_OK")
</pallas_src>

<mosaic_0001>
module attributes {stable_mosaic.version = 11 : i64} {
  func.func @_helix_kernel(%arg0: i32, %arg1: i32, %arg2: memref<8x256xf32, #tpu.memory_space<vmem>>, %arg3: memref<8x256xf32, #tpu.memory_space<vmem>>, %arg4: memref<8x1xf32, #tpu.memory_space<vmem>>, %arg5: memref<8x8x256xf32, #tpu.memory_space<vmem>>, %arg6: memref<8x8x256xf32, #tpu.memory_space<vmem>>) attributes {dimension_semantics = [#tpu.dimension_semantics<parallel>, #tpu.dimension_semantics<parallel>], iteration_bounds = array<i64: 1, 1>, scalar_prefetch = 0 : i64, scratch_operands = 0 : i64, tpu.core_type = #tpu.core_type<tc>, window_params = [{transform_indices = @transform_0, window_bounds = array<i64: 8, 256>}, {transform_indices = @transform_1, window_bounds = array<i64: 8, 256>}, {pipeline_mode = #tpu.pipeline_mode<synchronous>, transform_indices = @transform_2, window_bounds = array<i64: 8, 1>}, {transform_indices = @transform_3, window_bounds = array<i64: 8, 8, 256>}, {transform_indices = @transform_4, window_bounds = array<i64: 8, 8, 256>}]} {
    %c0 = arith.constant 0 : index
    %c0_0 = arith.constant 0 : index
    %0 = vector.load %arg4[%c0, %c0_0] : memref<8x1xf32, #tpu.memory_space<vmem>>, vector<8x1xf32>
    %c0_i32 = arith.constant 0 : i32
    %c8_i32 = arith.constant 8 : i32
    %1 = arith.addi %c0_i32, %c8_i32 : i32
    %c1_i32 = arith.constant 1 : i32
    scf.for %arg7 = %c0_i32 to %1 step %c1_i32  : i32 {
      %2 = arith.index_cast %arg7 : i32 to index
      %c0_2 = arith.constant 0 : index
      %3 = vector.load %arg2[%2, %c0_2] : memref<8x256xf32, #tpu.memory_space<vmem>>, vector<1x256xf32>
      %4 = arith.index_cast %arg7 : i32 to index
      %c0_3 = arith.constant 0 : index
      %5 = vector.load %arg3[%4, %c0_3] : memref<8x256xf32, #tpu.memory_space<vmem>>, vector<1x256xf32>
      %6 = vector.broadcast %0 : vector<8x1xf32> to vector<8x256xf32>
      %7 = vector.broadcast %3 : vector<1x256xf32> to vector<8x256xf32>
      %8 = arith.mulf %6, %7 : vector<8x256xf32>
      %9 = vector.broadcast %5 : vector<1x256xf32> to vector<8x256xf32>
      %10 = arith.addf %8, %9 : vector<8x256xf32>
      %cst = arith.constant 0.159154937 : f32
      %11 = vector.broadcast %cst : f32 to vector<8x256xf32>
      %12 = arith.mulf %8, %11 : vector<8x256xf32>
      %13 = math.cos %10 : vector<8x256xf32>
      %14 = arith.mulf %12, %13 : vector<8x256xf32>
      %15 = vector.shape_cast %14 : vector<8x256xf32> to vector<1x8x256xf32>
      %16 = arith.index_cast %arg7 : i32 to index
      %c0_4 = arith.constant 0 : index
      %c0_5 = arith.constant 0 : index
      %17 = vector.load %arg5[%16, %c0_4, %c0_5] : memref<8x8x256xf32, #tpu.memory_space<vmem>>, vector<1x8x256xf32>
      tpu.vector_store %arg5[%16, %c0_4, %c0_5], %15 {strides = array<i32>} : memref<8x8x256xf32, #tpu.memory_space<vmem>>, vector<1x8x256xf32>,
      %18 = math.sin %10 : vector<8x256xf32>
      %19 = arith.mulf %12, %18 : vector<8x256xf32>
      %20 = vector.shape_cast %19 : vector<8x256xf32> to vector<1x8x256xf32>
      %21 = arith.index_cast %arg7 : i32 to index
      %c0_6 = arith.constant 0 : index
      %c0_7 = arith.constant 0 : index
      %22 = vector.load %arg6[%21, %c0_6, %c0_7] : memref<8x8x256xf32, #tpu.memory_space<vmem>>, vector<1x8x256xf32>
      tpu.vector_store %arg6[%21, %c0_6, %c0_7], %20 {strides = array<i32>} : memref<8x8x256xf32, #tpu.memory_space<vmem>>, vector<1x8x256xf32>,
    }
    %c8_i32_1 = arith.constant 8 : i32
    return
  }
  func.func @transform_0(%arg0: i32, %arg1: i32) -> (i32, i32) {
    %c0_i32 = arith.constant 0 : i32
    return %arg0, %arg1 : i32, i32
  }
  func.func @transform_1(%arg0: i32, %arg1: i32) -> (i32, i32) {
    %c0_i32 = arith.constant 0 : i32
    return %arg0, %arg1 : i32, i32
  }
  func.func @transform_2(%arg0: i32, %arg1: i32) -> (i32, i32) {
    %c0_i32 = arith.constant 0 : i32
    %c0_i32_0 = arith.constant 0 : i32
    %c0_i32_1 = arith.constant 0 : i32
    return %c0_i32, %c0_i32_0 : i32, i32
  }
  func.func @transform_3(%arg0: i32, %arg1: i32) -> (i32, i32, i32) {
    %c0_i32 = arith.constant 0 : i32
    %c0_i32_0 = arith.constant 0 : i32
    return %arg0, %c0_i32, %arg1 : i32, i32, i32
  }
  func.func @transform_4(%arg0: i32, %arg1: i32) -> (i32, i32, i32) {
    %c0_i32 = arith.constant 0 : i32
    %c0_i32_0 = arith.constant 0 : i32
    return %arg0, %c0_i32, %arg1 : i32, i32, i32
  }
}

</mosaic_0001>

<llo_original>
// kernel: helix_embedding.1
$region0: #{helix_embedding.1}
  #allocation0 [shape = 'u32[]', space=smem, size = 0x4, offset = 0x4, fixed_abs, tag = 'smem constant byte address 0x4 - core index']
  #allocation1 [shape = 'u32[144,128]{1,0:T(1,128)}', space=vmem, size = 0x12000, scoped, tag = 'internal scratch']
  %s0 = inlined_call_operand.vmem [shape: f32[8,256], index: 0, kind: input, shape index: {}]
  %s1 = inlined_call_operand.vmem [shape: f32[8,256], index: 1, kind: input, shape index: {}]
  %s2 = inlined_call_operand.vmem [shape: f32[8,1], index: 2, kind: input, shape index: {}]
  %s3 = inlined_call_operand.vmem [shape: f32[8,8,256], index: 3, kind: output, shape index: {0}]
  %s4 = inlined_call_operand.vmem [shape: f32[8,8,256], index: 4, kind: output, shape index: {1}]
  %5 = xla_tuple %s3, %s4
  %s6 = sld [smem:[#allocation0]]
  $region37: #{helix_embedding.1} parent=0
    _
  %s8 = ssub.s32 1, %s6
  %s9 = scalar_select 0, %s8, %s6
  // Predicated region
  $region2: #{helix_embedding.1} parent=0 // pred_check
    _
  $region3: #{helix_embedding.1} parent=0 // pred_check_branch
    %11 = sbr.rel (0) target = $region5
  $region4: #{helix_embedding.1} parent=0 // pred_region
    _
  $region5: #{helix_embedding.1} parent=0 // pred_fallthru
    _
  // Predicated region
  $region6: #{helix_embedding.1} parent=0 // pred_check
    _
  $region7: #{helix_embedding.1} parent=0 // pred_check_branch
    %13 = sbr.rel (0) target = $region9
  $region8: #{helix_embedding.1} parent=0 // pred_region
    _
  $region9: #{helix_embedding.1} parent=0 // pred_fallthru
    _
  // Predicated region
  $region10: #{helix_embedding.1} parent=0 // pred_check
    _
  $region11: #{helix_embedding.1} parent=0 // pred_check_branch
    %15 = sbr.rel (0) target = $region13
  $region12: #{helix_embedding.1} parent=0 // pred_region
    _
  $region13: #{helix_embedding.1} parent=0 // pred_fallthru
    _
  %v16 = vld [vmem:[%s2] sm:$0xff]
  loop: start=0, step=1, limit=8
  $region14: #{helix_embedding.1} parent=0 // loop_pre_header
    _
  $region15: #{helix_embedding.1} parent=0 // loop_header
    %s18 = sphi 0, %s22
    %p19 = scmp.ge.s32.totalorder %s18, 8
  $region16: #{helix_embedding.1} parent=0 // loop_header_branch
    %21 = sbr.rel (%p19) target = $region20
  $region17: #{helix_embedding.1} parent=0 // loop_body
    %s23 = sshra.s32 %s18, 3
    %s24 = sand.u32 %s18, 7
    %s25 = sshra.s32 %s18, 3
    %s26 = sand.u32 %s18, 7
    %s27 = smul.u32 %s23, 2
    %s28 = smul.u32 %s27, 8
    %s29 = sadd.s32 %s28, %s26
    %s30 = scalar_lea.vmem %s0, %s29
    %v31 = vld [vmem:[%s30] ss:$8 sm:$0x3]
    %s32 = scalar_lea.vmem %s1, %s29
    %v33 = vld [vmem:[%s32] ss:$8 sm:$0x3]
    %35 = vset.pattern.permute.xlu0 0
    %36 = vperm.xlu0 %35, %v16
    %v37 = vpop.permute.xlu0 %36
    %v40 = vlaneseq
    %v41 = vshrl.u32 %v40, 7
    %v42 = vsub.s32 0, %v41
    %v43 = vrot.slane %v31, %v42
    %v44 = vlaneseq
    %v45 = vshrl.u32 %v44, 7
    %v46 = vsub.s32 1, %v45
    %v47 = vrot.slane %v31, %v46
    %v50 = vmul.f32 %v37, %v43
    %v51 = vmul.f32 %v37, %v47
    %v53 = vlaneseq
    %v54 = vshrl.u32 %v53, 7
    %v55 = vsub.s32 0, %v54
    %v56 = vrot.slane %v33, %v55
    %v57 = vlaneseq
    %v58 = vshrl.u32 %v57, 7
    %v59 = vsub.s32 1, %v58
    %v60 = vrot.slane %v33, %v59
    %v63 = vadd.f32 %v50, %v56
    %v64 = vadd.f32 %v51, %v60
    %v65 = vmul.f32 %v50, 0.15915494
    %v66 = vmul.f32 %v51, 0.15915494
    %v67 = vand.u32 2147483647, %v63
    %vm68 = vcmp.le.f32.partialorder %v67, 0.7853982
    %vm69 = vcmp.lt.s32.totalorder %v63, 0
    %v70 = vand.u32 %v63, 2139095040
    %v71 = vshrl.u32 %v70, 23
    %v72 = vsub.s32 %v71, 127
    %v73 = vand.u32 2147483647, %v63
    %v74 = vand.u32 %v73, 8388607
    %v75 = vor.u32 %v74, 8388608
    %v76 = vsub.s32 0, %v75
    %v77 = vadd.s32 %v72, 1
    %vm78 = vcmp.gt.s32.totalorder %v77, 0
    %v79 = vsel %vm78, %v77, 0
    %v80 = vshrl.u32 %v79, 5
    %v81 = vand.u32 %v79, 31
    %v82 = vsub.s32 32, %v81
    %v83 = vshrl.u32 683565275, %v82
    %v84 = vshll.u32 683565275, %v81
    %v85 = vshrl.u32 2475754826, %v82
    %v86 = vor.u32 %v84, %v85
    %v87 = vshll.u32 2475754826, %v81
    %v88 = vshrl.u32 2131351028, %v82
    %v89 = vor.u32 %v87, %v88
    %v90 = vshll.u32 2131351028, %v81
    %v91 = vshrl.u32 2102212464, %v82
    %v92 = vor.u32 %v90, %v91
    %v93 = vshll.u32 2102212464, %v81
    %v94 = vshrl.u32 920167782, %v82
    %v95 = vor.u32 %v93, %v94
    %v96 = vshll.u32 920167782, %v81
    %v97 = vshrl.u32 1326507024, %v82
    %v98 = vor.u32 %v96, %v97
    %vm99 = vcmp.lt.s32.totalorder %v80, 1
    %vm100 = vcmp.lt.s32.totalorder %v80, 2
    %vm101 = vcmp.lt.s32.totalorder %v80, 3
    %vm102 = vcmp.lt.s32.totalorder %v80, 4
    %v103 = vsel %vm99, %v83, %v86
    %v104 = vsel %vm102, %v92, 2102212464
    %v105 = vsel %vm101, %v89, %v104
    %v106 = vsel %vm100, %v103, %v105
    %v107 = vsel %vm99, %v86, %v89
    %v108 = vsel %vm102, %v95, 920167782
    %v109 = vsel %vm101, %v92, %v108
    %v110 = vsel %vm100, %v107, %v109
    %v111 = vsel %vm99, %v89, %v92
    %v112 = vsel %vm102, %v98, 1326507024
    %v113 = vsel %vm101, %v95, %v112
    %v114 = vsel %vm100, %v111, %v113
    %v115 = vshll.u32 %v75, 8
    %v116 = vmul.u32.u64.compose %v115, %v114
    %v117 = vextract.low.u32 %v116
    %v118 = vextract.high.u32 %v116
    %v119 = vmul.u32.u64.compose %v115, %v110
    %v120 = vextract.low.u32 %v119
    %v121 = vextract.high.u32 %v119
    %v122 = vmul.u32 %v115, %v106
    %v123 = vadd.s32 %v118, %v120
    %vm124 = vc.u32 %v118, %v120
    %v125 = vadd.s32 %v121, 1
    %v126 = vsel %vm124, %v125, %v121
    %v127 = vadd.s32 %v122, %v126
    %v128 = vadd.s32 %v127, 536870912
    %v129 = vshrl.u32 %v128, 30
    %v130 = vshll.u32 %v129, 30
    %v131 = vsub.s32 %v127, %v130
    %vm132 = vcmp.lt.s32.totalorder %v131, 0
    %v133 = vsub.s32 0, %v131
    %v134 = vsel %vm132, %v133, %v131
    %v135 = vclz %v134
    %v136 = vsub.s32 %v135, 2
    %vm137 = vcmp.gt.s32.totalorder 0, %v136
    %v138 = vsel %vm137, 0, %v136
    %v139 = vsub.s32 32, %v138
    %v140 = vshll.u32 %v131, %v138
    %v141 = vshrl.u32 %v123, %v139
    %v142 = vor.u32 %v140, %v141
    %v143 = vsub.s32 4294967266, %v138
    %v144 = vadd.s32 %v143, 127
    %v145 = vshll.u32 %v144, 23
    %v146 = vor.u32 4788187, %v145
    %v147 = vand.u32 2147483647, %v146
    %v149 = vcvt.s32.f32 %v142
    %v150 = vmul.f32 %v149, %v147
    %v151 = vxor.u32 %v150, 2147483648
    %v152 = vsel %vm69, %v151, %v150
    %v153 = vsub.s32 4, %v129
    %v154 = vsel %vm69, %v153, %v129
    %v155 = vsel %vm68, %v63, %v152
    %v156 = vsel %vm68, 0, %v154
    %v157 = vcosq.f32.pop %v155
    %v158 = vsinq.f32.pop %v155
    %vm159 = vweird.f32 %v63
    %v160 = vand.u32 %v156, 3
    %vm161 = vcmp.lt.s32.totalorder %v160, 2
    %vm162 = vcmp.eq.s32.totalorder %v160, 0
    %v163 = vxor.u32 %v158, 2147483648
    %v164 = vsel %vm162, %v157, %v163
    %vm165 = vcmp.eq.s32.totalorder %v160, 2
    %v166 = vxor.u32 %v157, 2147483648
    %v167 = vsel %vm165, %v166, %v158
    %v168 = vsel %vm161, %v164, %v167
    %v169 = vsel %vm159, nan, %v168
    %v170 = vand.u32 2147483647, %v64
    %vm171 = vcmp.le.f32.partialorder %v170, 0.7853982
    %vm172 = vcmp.lt.s32.totalorder %v64, 0
    %v173 = vand.u32 %v64, 2139095040
    %v174 = vshrl.u32 %v173, 23
    %v175 = vsub.s32 %v174, 127
    %v176 = vand.u32 2147483647, %v64
    %v177 = vand.u32 %v176, 8388607
    %v178 = vor.u32 %v177, 8388608
    %v179 = vsub.s32 0, %v178
    %v180 = vadd.s32 %v175, 1
    %vm181 = vcmp.gt.s32.totalorder %v180, 0
    %v182 = vsel %vm181, %v180, 0
    %v183 = vshrl.u32 %v182, 5
    %v184 = vand.u32 %v182, 31
    %v185 = vsub.s32 32, %v184
    %v186 = vshrl.u32 683565275, %v185
    %v187 = vshll.u32 683565275, %v184
    %v188 = vshrl.u32 2475754826, %v185
    %v189 = vor.u32 %v187, %v188
    %v190 = vshll.u32 2475754826, %v184
    %v191 = vshrl.u32 2131351028, %v185
    %v192 = vor.u32 %v190, %v191
    %v193 = vshll.u32 2131351028, %v184
    %v194 = vshrl.u32 2102212464, %v185
    %v195 = vor.u32 %v193, %v194
    %v196 = vshll.u32 2102212464, %v184
    %v197 = vshrl.u32 920167782, %v185
    %v198 = vor.u32 %v196, %v197
    %v199 = vshll.u32 920167782, %v184
    %v200 = vshrl.u32 1326507024, %v185
    %v201 = vor.u32 %v199, %v200
    %vm202 = vcmp.lt.s32.totalorder %v183, 1
    %vm203 = vcmp.lt.s32.totalorder %v183, 2
    %vm204 = vcmp.lt.s32.totalorder %v183, 3
    %vm205 = vcmp.lt.s32.totalorder %v183, 4
    %v206 = vsel %vm202, %v186, %v189
    %v207 = vsel %vm205, %v195, 2102212464
    %v208 = vsel %vm204, %v192, %v207
    %v209 = vsel %vm203, %v206, %v208
    %v210 = vsel %vm202, %v189, %v192
    %v211 = vsel %vm205, %v198, 920167782
    %v212 = vsel %vm204, %v195, %v211
    %v213 = vsel %vm203, %v210, %v212
    %v214 = vsel %vm202, %v192, %v195
    %v215 = vsel %vm205, %v201, 1326507024
    %v216 = vsel %vm204, %v198, %v215
    %v217 = vsel %vm203, %v214, %v216
    %v218 = vshll.u32 %v178, 8
    %v219 = vmul.u32.u64.compose %v218, %v217
    %v220 = vextract.low.u32 %v219
    %v221 = vextract.high.u32 %v219
    %v222 = vmul.u32.u64.compose %v218, %v213
    %v223 = vextract.low.u32 %v222
    %v224 = vextract.high.u32 %v222
    %v225 = vmul.u32 %v218, %v209
    %v226 = vadd.s32 %v221, %v223
    %vm227 = vc.u32 %v221, %v223
    %v228 = vadd.s32 %v224, 1
    %v229 = vsel %vm227, %v228, %v224
    %v230 = vadd.s32 %v225, %v229
    %v231 = vadd.s32 %v230, 536870912
    %v232 = vshrl.u32 %v231, 30
    %v233 = vshll.u32 %v232, 30
    %v234 = vsub.s32 %v230, %v233
    %vm235 = vcmp.lt.s32.totalorder %v234, 0
    %v236 = vsub.s32 0, %v234
    %v237 = vsel %vm235, %v236, %v234
    %v238 = vclz %v237
    %v239 = vsub.s32 %v238, 2
    %vm240 = vcmp.gt.s32.totalorder 0, %v239
    %v241 = vsel %vm240, 0, %v239
    %v242 = vsub.s32 32, %v241
    %v243 = vshll.u32 %v234, %v241
    %v244 = vshrl.u32 %v226, %v242
    %v245 = vor.u32 %v243, %v244
    %v246 = vsub.s32 4294967266, %v241
    %v247 = vadd.s32 %v246, 127
    %v248 = vshll.u32 %v247, 23
    %v249 = vor.u32 4788187, %v248
    %v250 = vand.u32 2147483647, %v249
    %v252 = vcvt.s32.f32 %v245
    %v253 = vmul.f32 %v252, %v250
    %v254 = vxor.u32 %v253, 2147483648
    %v255 = vsel %vm172, %v254, %v253
    %v256 = vsub.s32 4, %v232
    %v257 = vsel %vm172, %v256, %v232
    %v258 = vsel %vm171, %v64, %v255
    %v259 = vsel %vm171, 0, %v257
    %v260 = vcosq.f32.pop %v258
    %v261 = vsinq.f32.pop %v258
    %vm262 = vweird.f32 %v64
    %v263 = vand.u32 %v259, 3
    %vm264 = vcmp.lt.s32.totalorder %v263, 2
    %vm265 = vcmp.eq.s32.totalorder %v263, 0
    %v266 = vxor.u32 %v261, 2147483648
    %v267 = vsel %vm265, %v260, %v266
    %vm268 = vcmp.eq.s32.totalorder %v263, 2
    %v269 = vxor.u32 %v260, 2147483648
    %v270 = vsel %vm268, %v269, %v261
    %v271 = vsel %vm264, %v267, %v270
    %v272 = vsel %vm262, nan, %v271
    %v273 = vmul.f32 %v65, %v169
    %v274 = vmul.f32 %v66, %v272
    %s275 = smul.u32 %s18, 2
    %s276 = smul.addr %s275, 8
    %s277 = scalar_lea.vmem %s3, %s276
    %278 = vst [vmem:[%s277] sm:$0xff] %v273
    %279 = vst [vmem:[%s277 + $0x8] sm:$0xff] %v274
    %v280 = vand.u32 2147483647, %v63
    %vm281 = vcmp.le.f32.partialorder %v280, 0.7853982
    %vm282 = vcmp.lt.s32.totalorder %v63, 0
    %v283 = vand.u32 %v63, 2139095040
    %v284 = vshrl.u32 %v283, 23
    %v285 = vsub.s32 %v284, 127
    %v286 = vand.u32 2147483647, %v63
    %v287 = vand.u32 %v286, 8388607
    %v288 = vor.u32 %v287, 8388608
    %v289 = vsub.s32 0, %v288
    %v290 = vadd.s32 %v285, 1
    %vm291 = vcmp.gt.s32.totalorder %v290, 0
    %v292 = vsel %vm291, %v290, 0
    %v293 = vshrl.u32 %v292, 5
    %v294 = vand.u32 %v292, 31
    %v295 = vsub.s32 32, %v294
    %v296 = vshrl.u32 683565275, %v295
    %v297 = vshll.u32 683565275, %v294
    %v298 = vshrl.u32 2475754826, %v295
    %v299 = vor.u32 %v297, %v298
    %v300 = vshll.u32 2475754826, %v294
    %v301 = vshrl.u32 2131351028, %v295
    %v302 = vor.u32 %v300, %v301
    %v303 = vshll.u32 2131351028, %v294
    %v304 = vshrl.u32 2102212464, %v295
    %v305 = vor.u32 %v303, %v304
    %v306 = vshll.u32 2102212464, %v294
    %v307 = vshrl.u32 920167782, %v295
    %v308 = vor.u32 %v306, %v307
    %v309 = vshll.u32 920167782, %v294
    %v310 = vshrl.u32 1326507024, %v295
    %v311 = vor.u32 %v309, %v310
    %vm312 = vcmp.lt.s32.totalorder %v293, 1
    %vm313 = vcmp.lt.s32.totalorder %v293, 2
    %vm314 = vcmp.lt.s32.totalorder %v293, 3
    %vm315 = vcmp.lt.s32.totalorder %v293, 4
    %v316 = vsel %vm312, %v296, %v299
    %v317 = vsel %vm315, %v305, 2102212464
    %v318 = vsel %vm314, %v302, %v317
    %v319 = vsel %vm313, %v316, %v318
    %v320 = vsel %vm312, %v299, %v302
    %v321 = vsel %vm315, %v308, 920167782
    %v322 = vsel %vm314, %v305, %v321
    %v323 = vsel %vm313, %v320, %v322
    %v324 = vsel %vm312, %v302, %v305
    %v325 = vsel %vm315, %v311, 1326507024
    %v326 = vsel %vm314, %v308, %v325
    %v327 = vsel %vm313, %v324, %v326
    %v328 = vshll.u32 %v288, 8
    %v329 = vmul.u32.u64.compose %v328, %v327
    %v330 = vextract.low.u32 %v329
    %v331 = vextract.high.u32 %v329
    %v332 = vmul.u32.u64.compose %v328, %v323
    %v333 = vextract.low.u32 %v332
    %v334 = vextract.high.u32 %v332
    %v335 = vmul.u32 %v328, %v319
    %v336 = vadd.s32 %v331, %v333
    %vm337 = vc.u32 %v331, %v333
    %v338 = vadd.s32 %v334, 1
    %v339 = vsel %vm337, %v338, %v334
    %v340 = vadd.s32 %v335, %v339
    %v341 = vadd.s32 %v340, 536870912
    %v342 = vshrl.u32 %v341, 30
    %v343 = vshll.u32 %v342, 30
    %v344 = vsub.s32 %v340, %v343
    %vm345 = vcmp.lt.s32.totalorder %v344, 0
    %v346 = vsub.s32 0, %v344
    %v347 = vsel %vm345, %v346, %v344
    %v348 = vclz %v347
    %v349 = vsub.s32 %v348, 2
    %vm350 = vcmp.gt.s32.totalorder 0, %v349
    %v351 = vsel %vm350, 0, %v349
    %v352 = vsub.s32 32, %v351
    %v353 = vshll.u32 %v344, %v351
    %v354 = vshrl.u32 %v336, %v352
    %v355 = vor.u32 %v353, %v354
    %v356 = vsub.s32 4294967266, %v351
    %v357 = vadd.s32 %v356, 127
    %v358 = vshll.u32 %v357, 23
    %v359 = vor.u32 4788187, %v358
    %v360 = vand.u32 2147483647, %v359
    %v362 = vcvt.s32.f32 %v355
    %v363 = vmul.f32 %v362, %v360
    %v364 = vxor.u32 %v363, 2147483648
    %v365 = vsel %vm282, %v364, %v363
    %v366 = vsub.s32 4, %v342
    %v367 = vsel %vm282, %v366, %v342
    %v368 = vsel %vm281, %v63, %v365
    %v369 = vsel %vm281, 0, %v367
    %v370 = vcosq.f32.pop %v368
    %v371 = vsinq.f32.pop %v368
    %vm372 = vweird.f32 %v63
    %v373 = vadd.s32 %v369, 3
    %v374 = vand.u32 %v373, 3
    %vm375 = vcmp.lt.s32.totalorder %v374, 2
    %vm376 = vcmp.eq.s32.totalorder %v374, 0
    %v377 = vxor.u32 %v371, 2147483648
    %v378 = vsel %vm376, %v370, %v377
    %vm379 = vcmp.eq.s32.totalorder %v374, 2
    %v380 = vxor.u32 %v370, 2147483648
    %v381 = vsel %vm379, %v380, %v371
    %v382 = vsel %vm375, %v378, %v381
    %v383 = vsel %vm372, nan, %v382
    %v384 = vand.u32 2147483647, %v64
    %vm385 = vcmp.le.f32.partialorder %v384, 0.7853982
    %vm386 = vcmp.lt.s32.totalorder %v64, 0
    %v387 = vand.u32 %v64, 2139095040
    %v388 = vshrl.u32 %v387, 23
    %v389 = vsub.s32 %v388, 127
    %v390 = vand.u32 2147483647, %v64
    %v391 = vand.u32 %v390, 8388607
    %v392 = vor.u32 %v391, 8388608
    %v393 = vsub.s32 0, %v392
    %v394 = vadd.s32 %v389, 1
    %vm395 = vcmp.gt.s32.totalorder %v394, 0
    %v396 = vsel %vm395, %v394, 0
    %v397 = vshrl.u32 %v396, 5
    %v398 = vand.u32 %v396, 31
    %v399 = vsub.s32 32, %v398
    %v400 = vshrl.u32 683565275, %v399
    %v401 = vshll.u32 683565275, %v398
    %v402 = vshrl.u32 2475754826, %v399
    %v403 = vor.u32 %v401, %v402
    %v404 = vshll.u32 2475754826, %v398
    %v405 = vshrl.u32 2131351028, %v399
    %v406 = vor.u32 %v404, %v405
    %v407 = vshll.u32 2131351028, %v398
    %v408 = vshrl.u32 2102212464, %v399
    %v409 = vor.u32 %v407, %v408
    %v410 = vshll.u32 2102212464, %v398
    %v411 = vshrl.u32 920167782, %v399
    %v412 = vor.u32 %v410, %v411
    %v413 = vshll.u32 920167782, %v398
    %v414 = vshrl.u32 1326507024, %v399
    %v415 = vor.u32 %v413, %v414
    %vm416 = vcmp.lt.s32.totalorder %v397, 1
    %vm417 = vcmp.lt.s32.totalorder %v397, 2
    %vm418 = vcmp.lt.s32.totalorder %v397, 3
    %vm419 = vcmp.lt.s32.totalorder %v397, 4
    %v420 = vsel %vm416, %v400, %v403
    %v421 = vsel %vm419, %v409, 2102212464
    %v422 = vsel %vm418, %v406, %v421
    %v423 = vsel %vm417, %v420, %v422
    %v424 = vsel %vm416, %v403, %v406
    %v425 = vsel %vm419, %v412, 920167782
    %v426 = vsel %vm418, %v409, %v425
    %v427 = vsel %vm417, %v424, %v426
    %v428 = vsel %vm416, %v406, %v409
    %v429 = vsel %vm419, %v415, 1326507024
    %v430 = vsel %vm418, %v412, %v429
    %v431 = vsel %vm417, %v428, %v430
    %v432 = vshll.u32 %v392, 8
    %v433 = vmul.u32.u64.compose %v432, %v431
    %v434 = vextract.low.u32 %v433
    %v435 = vextract.high.u32 %v433
    %v436 = vmul.u32.u64.compose %v432, %v427
    %v437 = vextract.low.u32 %v436
    %v438 = vextract.high.u32 %v436
    %v439 = vmul.u32 %v432, %v423
    %v440 = vadd.s32 %v435, %v437
    %vm441 = vc.u32 %v435, %v437
    %v442 = vadd.s32 %v438, 1
    %v443 = vsel %vm441, %v442, %v438
    %v444 = vadd.s32 %v439, %v443
    %v445 = vadd.s32 %v444, 536870912
    %v446 = vshrl.u32 %v445, 30
    %v447 = vshll.u32 %v446, 30
    %v448 = vsub.s32 %v444, %v447
    %vm449 = vcmp.lt.s32.totalorder %v448, 0
    %v450 = vsub.s32 0, %v448
    %v451 = vsel %vm449, %v450, %v448
    %v452 = vclz %v451
    %v453 = vsub.s32 %v452, 2
    %vm454 = vcmp.gt.s32.totalorder 0, %v453
    %v455 = vsel %vm454, 0, %v453
    %v456 = vsub.s32 32, %v455
    %v457 = vshll.u32 %v448, %v455
    %v458 = vshrl.u32 %v440, %v456
    %v459 = vor.u32 %v457, %v458
    %v460 = vsub.s32 4294967266, %v455
    %v461 = vadd.s32 %v460, 127
    %v462 = vshll.u32 %v461, 23
    %v463 = vor.u32 4788187, %v462
    %v464 = vand.u32 2147483647, %v463
    %v466 = vcvt.s32.f32 %v459
    %v467 = vmul.f32 %v466, %v464
    %v468 = vxor.u32 %v467, 2147483648
    %v469 = vsel %vm386, %v468, %v467
    %v470 = vsub.s32 4, %v446
    %v471 = vsel %vm386, %v470, %v446
    %v472 = vsel %vm385, %v64, %v469
    %v473 = vsel %vm385, 0, %v471
    %v474 = vcosq.f32.pop %v472
    %v475 = vsinq.f32.pop %v472
    %vm476 = vweird.f32 %v64
    %v477 = vadd.s32 %v473, 3
    %v478 = vand.u32 %v477, 3
    %vm479 = vcmp.lt.s32.totalorder %v478, 2
    %vm480 = vcmp.eq.s32.totalorder %v478, 0
    %v481 = vxor.u32 %v475, 2147483648
    %v482 = vsel %vm480, %v474, %v481
    %vm483 = vcmp.eq.s32.totalorder %v478, 2
    %v484 = vxor.u32 %v474, 2147483648
    %v485 = vsel %vm483, %v484, %v475
    %v486 = vsel %vm479, %v482, %v485
    %v487 = vsel %vm476, nan, %v486
    %v488 = vmul.f32 %v65, %v383
    %v489 = vmul.f32 %v66, %v487
    %s490 = smul.addr %s275, 8
    %s491 = scalar_lea.vmem %s4, %s490
    %492 = vst [vmem:[%s491] sm:$0xff] %v488
    %493 = vst [vmem:[%s491 + $0x8] sm:$0xff] %v489
  $region18: #{helix_embedding.1} parent=0 // loop_footer
    %s22 = sadd.s32 1, %s18
  $region19: #{helix_embedding.1} parent=0 // loop_footer_branch
    %17 = sbr.rel target = $region15
  $region20: #{helix_embedding.1} parent=0 // loop_exit
    _
  // Predicated region
  $region21: #{helix_embedding.1} parent=0 // pred_check
    _
  $region22: #{helix_embedding.1} parent=0 // pred_check_branch
    %495 = sbr.rel (0) target = $region24
  $region23: #{helix_embedding.1} parent=0 // pred_region
    _
  $region24: #{helix_embedding.1} parent=0 // pred_fallthru
    _
  // Predicated region
  $region25: #{helix_embedding.1} parent=0 // pred_check
    _
  $region26: #{helix_embedding.1} parent=0 // pred_check_branch
    %497 = sbr.rel (0) target = $region28
  $region27: #{helix_embedding.1} parent=0 // pred_region
    _
  $region28: #{helix_embedding.1} parent=0 // pred_fallthru
    _
  // Predicated region
  $region29: #{helix_embedding.1} parent=0 // pred_check
    _
  $region30: #{helix_embedding.1} parent=0 // pred_check_branch
    %499 = sbr.rel (0) target = $region32
  $region31: #{helix_embedding.1} parent=0 // pred_region
    _
  $region32: #{helix_embedding.1} parent=0 // pred_fallthru
    _
  // Predicated region
  $region33: #{helix_embedding.1} parent=0 // pred_check
    _
  $region34: #{helix_embedding.1} parent=0 // pred_check_branch
    %501 = sbr.rel (0) target = $region36
  $region35: #{helix_embedding.1} parent=0 // pred_region
    _
  $region36: #{helix_embedding.1} parent=0 // pred_fallthru
    _

</llo_original>
